<compile_context>
chip_gen: v7x
topology: tpu7x:2x2x1
jax: 0.10.0
libtpu: 0.0.40
codegen_flags: <defaults>
</compile_context>

<pallas_src>
import functools

import jax
import jax.numpy as jnp
from jax import lax
from jax.experimental import pallas as pl
from jax.experimental.pallas import tpu as pltpu

LANE = 128
SUB = 8
_VMEM_LIMIT_BYTES = 48 * 1024 * 1024     # under v7x's 64 MiB physical VMEM
_VMEM_TILE_BUDGET = 40 * 1024 * 1024     # what we let the recurrence tiles use


# ----------------------------------------------------------------------------
# Kernels
# ----------------------------------------------------------------------------
def _rnn_recurrence_kernel(h0_ref, whh_ref, xproj_ref, y_ref, h_scratch,
                           *, n_inter, unroll):
    """grid = (batch_blocks, time_chunks); the time axis is sequential.

    h_t = tanh(x_proj_t + h_{t-1} @ W_hh^T); biases are folded into x_proj.
    The hidden state is carried in f32 scratch; matmul operands are cast to
    the compute dtype (bf16 or f32) per step.
    """
    # (Re-)load the initial hidden state at the start of each batch block.
    @pl.when(pl.program_id(1) == 0)
    def _():
        h_scratch[...] = h0_ref[...]

    whh = whh_ref[...]                       # (Hp, Hp) — grid-invariant block
    cdt = whh.dtype                          # MXU operand dtype
    out_dt = y_ref.dtype
    tc = xproj_ref.shape[0]                  # static chunk length
    bt = h_scratch.shape[0]

    if n_inter == 2:
        # Two independent sub-recurrences interleaved: block B's matmul fills
        # the MXU while block A's tanh sits in the EUP, and vice versa.
        half = bt // 2

        def body(s, carry):
            h_a, h_b = carry
            d_a = jnp.dot(h_a.astype(cdt), whh,
                          preferred_element_type=jnp.float32)
            d_b = jnp.dot(h_b.astype(cdt), whh,
                          preferred_element_type=jnp.float32)
            h_a = jnp.tanh(xproj_ref[s, 0:half, :].astype(jnp.float32) + d_a)
            h_b = jnp.tanh(xproj_ref[s, half:bt, :].astype(jnp.float32) + d_b)
            y_ref[s, 0:half, :] = h_a.astype(out_dt)
            y_ref[s, half:bt, :] = h_b.astype(out_dt)
            return (h_a, h_b)

        h_a, h_b = lax.fori_loop(
            0, tc, body, (h_scratch[0:half, :], h_scratch[half:bt, :]),
            unroll=unroll)
        h_scratch[0:half, :] = h_a
        h_scratch[half:bt, :] = h_b
    else:
        def body(s, h):
            d = jnp.dot(h.astype(cdt), whh,
                        preferred_element_type=jnp.float32)
            h = jnp.tanh(xproj_ref[s].astype(jnp.float32) + d)
            y_ref[s] = h.astype(out_dt)
            return h

        h = lax.fori_loop(0, tc, body, h_scratch[...], unroll=unroll)
        h_scratch[...] = h                   # carry to the next time chunk


def _head_kernel(y_ref, w_ref, b_ref, o_ref):
    """logits tile = Y_tile @ W_out^T_tile + b_out_tile (f32 accumulate)."""
    o_ref[...] = (jnp.dot(y_ref[...], w_ref[...],
                          preferred_element_type=jnp.float32)
                  + b_ref[...])


# ----------------------------------------------------------------------------
# Tiling helpers
# ----------------------------------------------------------------------------
def _round_up(n, m):
    return ((n + m - 1) // m) * m


def _pick_batch_block(bp, cap=256):
    """Rows per recurrence block: >=2 blocks once Bp >= 16 (v7x's 2 TCs get
    independent recurrences), each block a multiple of 8 sublanes, <= cap."""
    if bp < 16:
        return bp
    upper = min(cap, bp // 2)
    upper -= upper % SUB
    for bt in range(upper, SUB - 1, -SUB):
        if bp % bt == 0:
            return bt
    return SUB


def _pick_time_chunk(t, cap):
    """Largest divisor of T <= cap; if that is tiny (prime/awkward T), pad T
    instead.  Padded steps run on zero x_proj rows and are sliced off."""
    cap = max(SUB, (cap // SUB) * SUB)
    best = 1
    for c in range(min(cap, t), 0, -1):
        if t % c == 0:
            best = c
            break
    if best >= min(cap, 16):
        return best, t
    n_chunks = -(-t // cap)
    tc = _round_up(-(-t // n_chunks), SUB)
    return tc, tc * n_chunks


# ----------------------------------------------------------------------------
# Wrapper
# ----------------------------------------------------------------------------
def rnn_model_forward(inputs, state, params, vocab_size, *,
                      compute_dtype=jnp.bfloat16, t_chunk=128):
    """inputs: (B, T) int32 tokens.  state: (1, B, H) f32.
    Returns (logits (T*B, V) f32, new_state (1, B, H) f32) — matches
    RNNModel.forward.  compute_dtype=float32 gives PyTorch-exact numerics;
    bf16 (default) keeps the carried state / accumulation / tanh in f32.
    """
    w_ih, w_hh, b_ih, b_hh, w_out, b_out = params
    B, T = inputs.shape
    H = w_hh.shape[0]
    V = vocab_size

    cdt = jnp.dtype(compute_dtype)
    csize = cdt.itemsize

    Hp = _round_up(H, LANE)                  # lane-dense hidden dim
    Vp = _round_up(V, LANE)                  # lane-dense vocab dim
    Bp = _round_up(B, SUB)                   # sublane-dense batch dim

    # --- block / chunk selection (VMEM-budgeted) -----------------------------
    bt = _pick_batch_block(Bp)
    fixed_bytes = Hp * Hp * csize * 2 + bt * Hp * 4 * 3       # W_hh, h0, scratch
    per_step_bytes = 2 * 2 * bt * Hp * csize                  # x_proj + Y, x2buf
    tc_cap = max(SUB, (_VMEM_TILE_BUDGET - fixed_bytes) // per_step_bytes)
    tc, Tp = _pick_time_chunk(T, min(t_chunk, tc_cap))
    n_inter = 2 if (bt >= 16 and bt % 16 == 0) else 1
    unroll = min(8, tc)

    # --- glue (cheap XLA ops): gather instead of one-hot matmul, fused bias,
    #     zero padding to vreg-friendly shapes, pre-transposed weights. -------
    x_proj = jnp.take(w_ih.T, inputs.T, axis=0) + (b_ih + b_hh)   # (T,B,H) f32
    x_proj = jnp.pad(x_proj.astype(cdt),
                     ((0, Tp - T), (0, Bp - B), (0, Hp - H)))     # (Tp,Bp,Hp)
    whh_t = jnp.pad(w_hh.T, ((0, Hp - H), (0, Hp - H))).astype(cdt)
    h0 = jnp.pad(state[0].astype(jnp.float32), ((0, Bp - B), (0, Hp - H)))
    wout_t = jnp.pad(w_out.T, ((0, Hp - H), (0, Vp - V))).astype(cdt)
    bout = jnp.pad(b_out, (0, Vp - V)).reshape(1, Vp).astype(jnp.float32)

    # --- recurrent kernel: emits only Y (hidden states, compute_dtype). ------
    rec_kernel = functools.partial(_rnn_recurrence_kernel,
                                   n_inter=n_inter, unroll=unroll)
    y_pad = pl.pallas_call(
        rec_kernel,
        out_shape=jax.ShapeDtypeStruct((Tp, Bp, Hp), cdt),
        grid=(Bp // bt, Tp // tc),
        in_specs=[
            pl.BlockSpec((bt, Hp), lambda bb, t: (bb, 0)),          # h0
            pl.BlockSpec((Hp, Hp), lambda bb, t: (0, 0)),           # W_hh^T
            pl.BlockSpec((tc, bt, Hp), lambda bb, t: (t, bb, 0)),   # x_proj
        ],
        out_specs=pl.BlockSpec((tc, bt, Hp), lambda bb, t: (t, bb, 0)),
        scratch_shapes=[pltpu.VMEM((bt, Hp), jnp.float32)],         # f32 state
        compiler_params=pltpu.CompilerParams(
            # batch blocks are independent recurrences (v7x 2-TC split);
            # the time-chunk axis carries state and MUST stay sequential.
            dimension_semantics=("parallel", "arbitrary"),
            vmem_limit_bytes=_VMEM_LIMIT_BYTES),
    )(h0, whh_t, x_proj)

    # --- output head: one large lane-dense matmul over the REAL (t, b) rows. -
    R = T * B
    y2d = y_pad[:T, :B].reshape(R, Hp)       # drop time/batch padding first
    tm = 512 if R >= 512 else _round_up(R, SUB)
    Rp = _round_up(R, tm)
    if Rp != R:
        y2d = jnp.pad(y2d, ((0, Rp - R), (0, 0)))
    tn = 512 if Vp % 512 == 0 else (256 if Vp % 256 == 0 else 128)

    logits_pad = pl.pallas_call(
        _head_kernel,
        out_shape=jax.ShapeDtypeStruct((Rp, Vp), jnp.float32),
        grid=(Rp // tm, Vp // tn),
        in_specs=[
            pl.BlockSpec((tm, Hp), lambda i, j: (i, 0)),            # Y rows
            pl.BlockSpec((Hp, tn), lambda i, j: (0, j)),            # W_out^T
            pl.BlockSpec((1, tn), lambda i, j: (0, j)),             # b_out
        ],
        out_specs=pl.BlockSpec((tm, tn), lambda i, j: (i, j)),
        compiler_params=pltpu.CompilerParams(
            dimension_semantics=("parallel", "parallel"),
            vmem_limit_bytes=_VMEM_LIMIT_BYTES),
    )(y2d, wout_t, bout)

    # Slice padding back out; rows are t-major then batch, like PyTorch.
    logits = logits_pad[:R, :V]
    new_state = y_pad[T - 1, :B, :H].astype(jnp.float32)[None]    # (1, B, H)
    return logits, new_state


# ----------------------------------------------------------------------------
# Parameter init (nn.RNN / nn.Linear shapes) and pure-JAX reference
# ----------------------------------------------------------------------------
def init_params(key, vocab_size, num_hiddens):
    k = jax.random.split(key, 6)
    s = 1.0 / jnp.sqrt(num_hiddens)
    w_ih = jax.random.uniform(k[0], (num_hiddens, vocab_size), jnp.float32, -s, s)
    w_hh = jax.random.uniform(k[1], (num_hiddens, num_hiddens), jnp.float32, -s, s)
    b_ih = jax.random.uniform(k[2], (num_hiddens,), jnp.float32, -s, s)
    b_hh = jax.random.uniform(k[3], (num_hiddens,), jnp.float32, -s, s)
    w_out = jax.random.uniform(k[4], (vocab_size, num_hiddens), jnp.float32, -s, s)
    b_out = jax.random.uniform(k[5], (vocab_size,), jnp.float32, -s, s)
    return (w_ih, w_hh, b_ih, b_hh, w_out, b_out)


def _reference_forward(inputs, state, params, vocab_size,
                       compute_dtype=jnp.float32):
    """Plain-JAX mirror of RNNModel.forward.

    With compute_dtype=float32 this is exactly the PyTorch module's math
    (one-hot matmul RNN + Linear head).  With bf16 it applies the same
    mixed-precision policy as the kernels (bf16 matmul operands / Y stream,
    f32 accumulation, carried state and tanh).
    """
    w_ih, w_hh, b_ih, b_hh, w_out, b_out = params
    cdt = jnp.dtype(compute_dtype)
    X = jax.nn.one_hot(inputs.T, vocab_size, dtype=jnp.float32)    # (T, B, V)
    h = state[0].astype(jnp.float32)
    w_hh_c = w_hh.astype(cdt)
    w_out_c = w_out.astype(cdt)

    def step(h, x_t):
        x_proj = (x_t @ w_ih.T + b_ih + b_hh).astype(cdt)
        hh = jnp.dot(h.astype(cdt), w_hh_c.T,
                     preferred_element_type=jnp.float32)
        h_new = jnp.tanh(x_proj.astype(jnp.float32) + hh)
        return h_new, h_new.astype(cdt)

    h_last, Y = lax.scan(step, h, X)
    out = (jnp.dot(Y.reshape(-1, Y.shape[-1]), w_out_c.T,
                   preferred_element_type=jnp.float32) + b_out)
    return out, h_last.astype(cdt).astype(jnp.float32)[None]


# TODO(synk): only the single-layer, unidirectional tanh nn.RNN variant of
# RNNModel is implemented (no bidirectional / multi-layer / LSTM rnn_layer).

if __name__ == "__main__":
    def _run_case(name, *, vocab_size, num_hiddens, batch_size, seq_len,
                  compute_dtype, atol, rtol):
        key = jax.random.PRNGKey(0)
        k_tok, k_par = jax.random.split(key)
        inputs = jax.random.randint(k_tok, (batch_size, seq_len), 0,
                                    vocab_size, dtype=jnp.int32)
        params = init_params(k_par, vocab_size, num_hiddens)
        # begin_state: zeros of shape (num_directions*num_layers, B, H)
        state = jnp.zeros((1, batch_size, num_hiddens), jnp.float32)

        out, new_state = rnn_model_forward(inputs, state, params, vocab_size,
                                           compute_dtype=compute_dtype)
        out = jax.block_until_ready(out)
        new_state = jax.block_until_ready(new_state)

        ref_out, ref_state = _reference_forward(inputs, state, params,
                                                vocab_size,
                                                compute_dtype=compute_dtype)
        assert out.shape == (seq_len * batch_size, vocab_size), name
        assert new_state.shape == (1, batch_size, num_hiddens), name
        assert jnp.allclose(out, ref_out, atol=atol, rtol=rtol), name
        assert jnp.allclose(new_state, ref_state, atol=atol, rtol=rtol), name

    # 1) f32 path: PyTorch-exact numerics at the module's small default shapes.
    _run_case("f32", vocab_size=32, num_hiddens=32, batch_size=2, seq_len=8,
              compute_dtype=jnp.float32, atol=1e-4, rtol=1e-4)
    # 2) bf16 path: exercises 2 parallel batch blocks, in-kernel interleaving
    #    of two sub-recurrences, time-axis padding (T=13) and the bf16 head.
    _run_case("bf16", vocab_size=80, num_hiddens=64, batch_size=32, seq_len=13,
              compute_dtype=jnp.bfloat16, atol=2e-3, rtol=2e-3)

    print("KERNEL_OK")
</pallas_src>

<mosaic_0001>
module attributes {stable_mosaic.version = 11 : i64} {
  func.func @_rnn_recurrence_kernel(%arg0: i32, %arg1: i32, %arg2: memref<8x128xf32, #tpu.memory_space<vmem>>, %arg3: memref<128x128xf32, #tpu.memory_space<vmem>>, %arg4: memref<8x8x128xf32, #tpu.memory_space<vmem>>, %arg5: memref<8x8x128xf32, #tpu.memory_space<vmem>>, %arg6: memref<8x128xf32, #tpu.memory_space<vmem>>) attributes {dimension_semantics = [#tpu.dimension_semantics<parallel>, #tpu.dimension_semantics<arbitrary>], iteration_bounds = array<i64: 1, 1>, scalar_prefetch = 0 : i64, scratch_operands = 1 : i64, tpu.core_type = #tpu.core_type<tc>, window_params = [{transform_indices = @transform_0, window_bounds = array<i64: 8, 128>}, {pipeline_mode = #tpu.pipeline_mode<synchronous>, transform_indices = @transform_1, window_bounds = array<i64: 128, 128>}, {transform_indices = @transform_2, window_bounds = array<i64: 8, 8, 128>}, {transform_indices = @transform_3, window_bounds = array<i64: 8, 8, 128>}]} {
    %c0_i32 = arith.constant 0 : i32
    %0 = arith.cmpi eq, %arg1, %c0_i32 : i32
    %1 = arith.extui %0 : i1 to i32
    %c0_i32_0 = arith.constant 0 : i32
    %2 = arith.cmpi ne, %1, %c0_i32_0 : i32
    scf.if %2 {
      %c0_46 = arith.constant 0 : index
      %c0_47 = arith.constant 0 : index
      %86 = vector.load %arg2[%c0_46, %c0_47] : memref<8x128xf32, #tpu.memory_space<vmem>>, vector<8x128xf32>
      %c0_48 = arith.constant 0 : index
      %c0_49 = arith.constant 0 : index
      %87 = vector.load %arg6[%c0_48, %c0_49] : memref<8x128xf32, #tpu.memory_space<vmem>>, vector<8x128xf32>
      tpu.vector_store %arg6[%c0_48, %c0_49], %86 {strides = array<i32>} : memref<8x128xf32, #tpu.memory_space<vmem>>, vector<8x128xf32>,
    } else {
    }
    %c0 = arith.constant 0 : index
    %c0_1 = arith.constant 0 : index
    %3 = vector.load %arg3[%c0, %c0_1] : memref<128x128xf32, #tpu.memory_space<vmem>>, vector<128x128xf32>
    %c0_2 = arith.constant 0 : index
    %c0_3 = arith.constant 0 : index
    %4 = vector.load %arg6[%c0_2, %c0_3] : memref<8x128xf32, #tpu.memory_space<vmem>>, vector<8x128xf32>
    %c0_i32_4 = arith.constant 0 : i32
    %cst = arith.constant dense<0.000000e+00> : vector<8x128xf32>
    %5 = tpu.matmul %4, %3, %cst {dimension_numbers = #tpu.dot_dimension_numbers<[1], [0], [0], [1], [0, 0, 1, 1], [], []>} : vector<8x128xf32>, vector<128x128xf32>, vector<8x128xf32> -> vector<8x128xf32>
    %6 = arith.index_cast %c0_i32_4 : i32 to index
    %c0_5 = arith.constant 0 : index
    %c0_6 = arith.constant 0 : index
    %7 = vector.load %arg4[%6, %c0_5, %c0_6] : memref<8x8x128xf32, #tpu.memory_space<vmem>>, vector<1x8x128xf32>
    %8 = vector.shape_cast %7 : vector<1x8x128xf32> to vector<8x128xf32>
    %9 = arith.addf %8, %5 : vector<8x128xf32>
    %10 = math.tanh %9 : vector<8x128xf32>
    %11 = arith.index_cast %c0_i32_4 : i32 to index
    %c0_7 = arith.constant 0 : index
    %c0_8 = arith.constant 0 : index
    %12 = vector.load %arg5[%11, %c0_7, %c0_8] : memref<8x8x128xf32, #tpu.memory_space<vmem>>, vector<1x8x128xf32>
    %13 = vector.shape_cast %12 : vector<1x8x128xf32> to vector<8x128xf32>
    %14 = vector.shape_cast %10 : vector<8x128xf32> to vector<1x8x128xf32>
    tpu.vector_store %arg5[%11, %c0_7, %c0_8], %14 {strides = array<i32>} : memref<8x8x128xf32, #tpu.memory_space<vmem>>, vector<1x8x128xf32>,
    %c1_i32 = arith.constant 1 : i32
    %cst_9 = arith.constant dense<0.000000e+00> : vector<8x128xf32>
    %15 = tpu.matmul %10, %3, %cst_9 {dimension_numbers = #tpu.dot_dimension_numbers<[1], [0], [0], [1], [0, 0, 1, 1], [], []>} : vector<8x128xf32>, vector<128x128xf32>, vector<8x128xf32> -> vector<8x128xf32>
    %16 = arith.index_cast %c1_i32 : i32 to index
    %c0_10 = arith.constant 0 : index
    %c0_11 = arith.constant 0 : index
    %17 = vector.load %arg4[%16, %c0_10, %c0_11] : memref<8x8x128xf32, #tpu.memory_space<vmem>>, vector<1x8x128xf32>
    %18 = vector.shape_cast %17 : vector<1x8x128xf32> to vector<8x128xf32>
    %19 = arith.addf %18, %15 : vector<8x128xf32>
    %20 = math.tanh %19 : vector<8x128xf32>
    %21 = arith.index_cast %c1_i32 : i32 to index
    %c0_12 = arith.constant 0 : index
    %c0_13 = arith.constant 0 : index
    %22 = vector.load %arg5[%21, %c0_12, %c0_13] : memref<8x8x128xf32, #tpu.memory_space<vmem>>, vector<1x8x128xf32>
    %23 = vector.shape_cast %22 : vector<1x8x128xf32> to vector<8x128xf32>
    %24 = vector.shape_cast %20 : vector<8x128xf32> to vector<1x8x128xf32>
    tpu.vector_store %arg5[%21, %c0_12, %c0_13], %24 {strides = array<i32>} : memref<8x8x128xf32, #tpu.memory_space<vmem>>, vector<1x8x128xf32>,
    %c2_i32 = arith.constant 2 : i32
    %cst_14 = arith.constant dense<0.000000e+00> : vector<8x128xf32>
    %25 = tpu.matmul %20, %3, %cst_14 {dimension_numbers = #tpu.dot_dimension_numbers<[1], [0], [0], [1], [0, 0, 1, 1], [], []>} : vector<8x128xf32>, vector<128x128xf32>, vector<8x128xf32> -> vector<8x128xf32>
    %26 = arith.index_cast %c2_i32 : i32 to index
    %c0_15 = arith.constant 0 : index
    %c0_16 = arith.constant 0 : index
    %27 = vector.load %arg4[%26, %c0_15, %c0_16] : memref<8x8x128xf32, #tpu.memory_space<vmem>>, vector<1x8x128xf32>
    %28 = vector.shape_cast %27 : vector<1x8x128xf32> to vector<8x128xf32>
    %29 = arith.addf %28, %25 : vector<8x128xf32>
    %30 = math.tanh %29 : vector<8x128xf32>
    %31 = arith.index_cast %c2_i32 : i32 to index
    %c0_17 = arith.constant 0 : index
    %c0_18 = arith.constant 0 : index
    %32 = vector.load %arg5[%31, %c0_17, %c0_18] : memref<8x8x128xf32, #tpu.memory_space<vmem>>, vector<1x8x128xf32>
    %33 = vector.shape_cast %32 : vector<1x8x128xf32> to vector<8x128xf32>
    %34 = vector.shape_cast %30 : vector<8x128xf32> to vector<1x8x128xf32>
    tpu.vector_store %arg5[%31, %c0_17, %c0_18], %34 {strides = array<i32>} : memref<8x8x128xf32, #tpu.memory_space<vmem>>, vector<1x8x128xf32>,
    %c3_i32 = arith.constant 3 : i32
    %cst_19 = arith.constant dense<0.000000e+00> : vector<8x128xf32>
    %35 = tpu.matmul %30, %3, %cst_19 {dimension_numbers = #tpu.dot_dimension_numbers<[1], [0], [0], [1], [0, 0, 1, 1], [], []>} : vector<8x128xf32>, vector<128x128xf32>, vector<8x128xf32> -> vector<8x128xf32>
    %36 = arith.index_cast %c3_i32 : i32 to index
    %c0_20 = arith.constant 0 : index
    %c0_21 = arith.constant 0 : index
    %37 = vector.load %arg4[%36, %c0_20, %c0_21] : memref<8x8x128xf32, #tpu.memory_space<vmem>>, vector<1x8x128xf32>
    %38 = vector.shape_cast %37 : vector<1x8x128xf32> to vector<8x128xf32>
    %39 = arith.addf %38, %35 : vector<8x128xf32>
    %40 = math.tanh %39 : vector<8x128xf32>
    %41 = arith.index_cast %c3_i32 : i32 to index
    %c0_22 = arith.constant 0 : index
    %c0_23 = arith.constant 0 : index
    %42 = vector.load %arg5[%41, %c0_22, %c0_23] : memref<8x8x128xf32, #tpu.memory_space<vmem>>, vector<1x8x128xf32>
    %43 = vector.shape_cast %42 : vector<1x8x128xf32> to vector<8x128xf32>
    %44 = vector.shape_cast %40 : vector<8x128xf32> to vector<1x8x128xf32>
    tpu.vector_store %arg5[%41, %c0_22, %c0_23], %44 {strides = array<i32>} : memref<8x8x128xf32, #tpu.memory_space<vmem>>, vector<1x8x128xf32>,
    %c4_i32 = arith.constant 4 : i32
    %cst_24 = arith.constant dense<0.000000e+00> : vector<8x128xf32>
    %45 = tpu.matmul %40, %3, %cst_24 {dimension_numbers = #tpu.dot_dimension_numbers<[1], [0], [0], [1], [0, 0, 1, 1], [], []>} : vector<8x128xf32>, vector<128x128xf32>, vector<8x128xf32> -> vector<8x128xf32>
    %46 = arith.index_cast %c4_i32 : i32 to index
    %c0_25 = arith.constant 0 : index
    %c0_26 = arith.constant 0 : index
    %47 = vector.load %arg4[%46, %c0_25, %c0_26] : memref<8x8x128xf32, #tpu.memory_space<vmem>>, vector<1x8x128xf32>
    %48 = vector.shape_cast %47 : vector<1x8x128xf32> to vector<8x128xf32>
    %49 = arith.addf %48, %45 : vector<8x128xf32>
    %50 = math.tanh %49 : vector<8x128xf32>
    %51 = arith.index_cast %c4_i32 : i32 to index
    %c0_27 = arith.constant 0 : index
    %c0_28 = arith.constant 0 : index
    %52 = vector.load %arg5[%51, %c0_27, %c0_28] : memref<8x8x128xf32, #tpu.memory_space<vmem>>, vector<1x8x128xf32>
    %53 = vector.shape_cast %52 : vector<1x8x128xf32> to vector<8x128xf32>
    %54 = vector.shape_cast %50 : vector<8x128xf32> to vector<1x8x128xf32>
    tpu.vector_store %arg5[%51, %c0_27, %c0_28], %54 {strides = array<i32>} : memref<8x8x128xf32, #tpu.memory_space<vmem>>, vector<1x8x128xf32>,
    %c5_i32 = arith.constant 5 : i32
    %cst_29 = arith.constant dense<0.000000e+00> : vector<8x128xf32>
    %55 = tpu.matmul %50, %3, %cst_29 {dimension_numbers = #tpu.dot_dimension_numbers<[1], [0], [0], [1], [0, 0, 1, 1], [], []>} : vector<8x128xf32>, vector<128x128xf32>, vector<8x128xf32> -> vector<8x128xf32>
    %56 = arith.index_cast %c5_i32 : i32 to index
    %c0_30 = arith.constant 0 : index
    %c0_31 = arith.constant 0 : index
    %57 = vector.load %arg4[%56, %c0_30, %c0_31] : memref<8x8x128xf32, #tpu.memory_space<vmem>>, vector<1x8x128xf32>
    %58 = vector.shape_cast %57 : vector<1x8x128xf32> to vector<8x128xf32>
    %59 = arith.addf %58, %55 : vector<8x128xf32>
    %60 = math.tanh %59 : vector<8x128xf32>
    %61 = arith.index_cast %c5_i32 : i32 to index
    %c0_32 = arith.constant 0 : index
    %c0_33 = arith.constant 0 : index
    %62 = vector.load %arg5[%61, %c0_32, %c0_33] : memref<8x8x128xf32, #tpu.memory_space<vmem>>, vector<1x8x128xf32>
    %63 = vector.shape_cast %62 : vector<1x8x128xf32> to vector<8x128xf32>
    %64 = vector.shape_cast %60 : vector<8x128xf32> to vector<1x8x128xf32>
    tpu.vector_store %arg5[%61, %c0_32, %c0_33], %64 {strides = array<i32>} : memref<8x8x128xf32, #tpu.memory_space<vmem>>, vector<1x8x128xf32>,
    %c6_i32 = arith.constant 6 : i32
    %cst_34 = arith.constant dense<0.000000e+00> : vector<8x128xf32>
    %65 = tpu.matmul %60, %3, %cst_34 {dimension_numbers = #tpu.dot_dimension_numbers<[1], [0], [0], [1], [0, 0, 1, 1], [], []>} : vector<8x128xf32>, vector<128x128xf32>, vector<8x128xf32> -> vector<8x128xf32>
    %66 = arith.index_cast %c6_i32 : i32 to index
    %c0_35 = arith.constant 0 : index
    %c0_36 = arith.constant 0 : index
    %67 = vector.load %arg4[%66, %c0_35, %c0_36] : memref<8x8x128xf32, #tpu.memory_space<vmem>>, vector<1x8x128xf32>
    %68 = vector.shape_cast %67 : vector<1x8x128xf32> to vector<8x128xf32>
    %69 = arith.addf %68, %65 : vector<8x128xf32>
    %70 = math.tanh %69 : vector<8x128xf32>
    %71 = arith.index_cast %c6_i32 : i32 to index
    %c0_37 = arith.constant 0 : index
    %c0_38 = arith.constant 0 : index
    %72 = vector.load %arg5[%71, %c0_37, %c0_38] : memref<8x8x128xf32, #tpu.memory_space<vmem>>, vector<1x8x128xf32>
    %73 = vector.shape_cast %72 : vector<1x8x128xf32> to vector<8x128xf32>
    %74 = vector.shape_cast %70 : vector<8x128xf32> to vector<1x8x128xf32>
    tpu.vector_store %arg5[%71, %c0_37, %c0_38], %74 {strides = array<i32>} : memref<8x8x128xf32, #tpu.memory_space<vmem>>, vector<1x8x128xf32>,
    %c7_i32 = arith.constant 7 : i32
    %cst_39 = arith.constant dense<0.000000e+00> : vector<8x128xf32>
    %75 = tpu.matmul %70, %3, %cst_39 {dimension_numbers = #tpu.dot_dimension_numbers<[1], [0], [0], [1], [0, 0, 1, 1], [], []>} : vector<8x128xf32>, vector<128x128xf32>, vector<8x128xf32> -> vector<8x128xf32>
    %76 = arith.index_cast %c7_i32 : i32 to index
    %c0_40 = arith.constant 0 : index
    %c0_41 = arith.constant 0 : index
    %77 = vector.load %arg4[%76, %c0_40, %c0_41] : memref<8x8x128xf32, #tpu.memory_space<vmem>>, vector<1x8x128xf32>
    %78 = vector.shape_cast %77 : vector<1x8x128xf32> to vector<8x128xf32>
    %79 = arith.addf %78, %75 : vector<8x128xf32>
    %80 = math.tanh %79 : vector<8x128xf32>
    %81 = arith.index_cast %c7_i32 : i32 to index
    %c0_42 = arith.constant 0 : index
    %c0_43 = arith.constant 0 : index
    %82 = vector.load %arg5[%81, %c0_42, %c0_43] : memref<8x8x128xf32, #tpu.memory_space<vmem>>, vector<1x8x128xf32>
    %83 = vector.shape_cast %82 : vector<1x8x128xf32> to vector<8x128xf32>
    %84 = vector.shape_cast %80 : vector<8x128xf32> to vector<1x8x128xf32>
    tpu.vector_store %arg5[%81, %c0_42, %c0_43], %84 {strides = array<i32>} : memref<8x8x128xf32, #tpu.memory_space<vmem>>, vector<1x8x128xf32>,
    %c8_i32 = arith.constant 8 : i32
    %c0_44 = arith.constant 0 : index
    %c0_45 = arith.constant 0 : index
    %85 = vector.load %arg6[%c0_44, %c0_45] : memref<8x128xf32, #tpu.memory_space<vmem>>, vector<8x128xf32>
    tpu.vector_store %arg6[%c0_44, %c0_45], %80 {strides = array<i32>} : memref<8x128xf32, #tpu.memory_space<vmem>>, vector<8x128xf32>,
    return
  }
  func.func @transform_0(%arg0: i32, %arg1: i32) -> (i32, i32) {
    %c0_i32 = arith.constant 0 : i32
    %c0_i32_0 = arith.constant 0 : i32
    return %arg0, %c0_i32 : i32, i32
  }
  func.func @transform_1(%arg0: i32, %arg1: i32) -> (i32, i32) {
    %c0_i32 = arith.constant 0 : i32
    %c0_i32_0 = arith.constant 0 : i32
    %c0_i32_1 = arith.constant 0 : i32
    return %c0_i32, %c0_i32_0 : i32, i32
  }
  func.func @transform_2(%arg0: i32, %arg1: i32) -> (i32, i32, i32) {
    %c0_i32 = arith.constant 0 : i32
    %c0_i32_0 = arith.constant 0 : i32
    return %arg1, %arg0, %c0_i32 : i32, i32, i32
  }
  func.func @transform_3(%arg0: i32, %arg1: i32) -> (i32, i32, i32) {
    %c0_i32 = arith.constant 0 : i32
    %c0_i32_0 = arith.constant 0 : i32
    return %arg1, %arg0, %c0_i32 : i32, i32, i32
  }
}

</mosaic_0001>

<llo_original>
// kernel: tpu_custom_call.1
$region0: #{tpu_custom_call.1}
  #allocation0 [shape = 'u32[]', space=smem, size = 0x4, offset = 0x4, fixed_abs, tag = 'smem constant byte address 0x4 - core index']
  #allocation1 [shape = 'u32[144,128]{1,0:T(1,128)}', space=vmem, size = 0x12000, scoped, tag = 'internal scratch']
  #allocation2 [shape = 'f32[8,128]{1,0:T(8,128)}', space=vmem, size = 0x1000, scoped, tag = 'scratch operand']
  %s0 = inlined_call_operand.hbm [shape: f32[8,128], index: 0, kind: input, shape index: {}]
  %s1 = inlined_call_operand.hbm [shape: f32[128,128], index: 1, kind: input, shape index: {}]
  %s2 = inlined_call_operand.hbm [shape: f32[8,8,128], index: 2, kind: input, shape index: {}]
  %s3 = inlined_call_operand.hbm [shape: f32[8,8,128], index: 3, kind: output, shape index: {}]
  %s4 = sld [smem:[#allocation0]]
  $region38: #{tpu_custom_call.1} parent=0
    _
  %s6 = ssub.s32 1, %s4
  %s7 = scalar_select 0, %s6, %s4
  $region1: #{tpu_custom_call.1} parent=0
    #allocation3 [shape = 'u8[4096]{0}', space=vmem, size = 0x1000, scoped, tag = 'input window, operand 0, single buffered']
    #allocation4 [shape = 's32[1]{0}', space=sflag, size = 0x4, scoped, tag = 'scoped memory for tpu_custom_call.1']
    #allocation5 [shape = 's32[1]{0}', space=sflag, size = 0x4, scoped, tag = 'scoped memory for tpu_custom_call.1']
    #allocation6 [shape = 'u8[65536]{0}', space=vmem, size = 0x10000, scoped, tag = 'input window, operand 1, single buffered']
    #allocation7 [shape = 's32[1]{0}', space=sflag, size = 0x4, scoped, tag = 'scoped memory for tpu_custom_call.1']
    #allocation8 [shape = 'u8[32768]{0}', space=vmem, size = 0x8000, scoped, tag = 'input window, operand 2, single buffered']
    #allocation9 [shape = 'u8[32768]{0}', space=vmem, size = 0x8000, scoped, tag = 'output window, operand 0, single buffered']
    %8 = vsyncpa [#allocation4], 0
    %9 = vsyncpa [#allocation7], 0
    %10 = vsyncpa [#allocation5], 0
    // Predicated region
    $region2: #{tpu_custom_call.1} parent=1 // pred_check
      _
    $region3: #{tpu_custom_call.1} parent=1 // pred_check_branch
      %12 = sbr.rel (0) target = $region5
    $region4: #{tpu_custom_call.1} parent=1 // pred_region
      %s14 = ssub.s32 128, 128
      %15 = vsyncadd [#allocation4], %s14
      %s17 = sshll.u32 [#allocation3], 4
      %s18 = int_to_ptr.vmem [resolvable:$true] %s17
      %20 = dma.hbm_to_vmem [thread:$0]  %s0, 128, %s18, [#allocation4]
    $region5: #{tpu_custom_call.1} parent=1 // pred_fallthru
      _
    // Predicated region
    $region6: #{tpu_custom_call.1} parent=1 // pred_check
      _
    $region7: #{tpu_custom_call.1} parent=1 // pred_check_branch
      %22 = sbr.rel (0) target = $region9
    $region8: #{tpu_custom_call.1} parent=1 // pred_region
      %s24 = ssub.s32 2048, 2048
      %25 = vsyncadd [#allocation7], %s24
      %s26 = sshll.u32 [#allocation6], 4
      %s27 = int_to_ptr.vmem [resolvable:$true] %s26
      %32 = dma.hbm_to_vmem [thread:$0]  %s1, 2048, %s27, [#allocation7], 128, 128, 8
    $region9: #{tpu_custom_call.1} parent=1 // pred_fallthru
      _
    // Predicated region
    $region10: #{tpu_custom_call.1} parent=1 // pred_check
      _
    $region11: #{tpu_custom_call.1} parent=1 // pred_check_branch
      %34 = sbr.rel (0) target = $region13
    $region12: #{tpu_custom_call.1} parent=1 // pred_region
      %s36 = ssub.s32 1024, 1024
      %37 = vsyncadd [#allocation7], %s36
      %s38 = sshll.u32 [#allocation8], 4
      %s39 = int_to_ptr.vmem [resolvable:$true] %s38
      %44 = dma.hbm_to_vmem [thread:$0]  %s2, 1024, %s39, [#allocation7], 128, 128, 8
    $region13: #{tpu_custom_call.1} parent=1 // pred_fallthru
      _
    // Predicated region
    $region14: #{tpu_custom_call.1} parent=1 // pred_check
      _
    $region15: #{tpu_custom_call.1} parent=1 // pred_check_branch
      %46 = sbr.rel (0) target = $region17
    $region16: #{tpu_custom_call.1} parent=1 // pred_region
      %47 = dma.done [#allocation4], 128
    $region17: #{tpu_custom_call.1} parent=1 // pred_fallthru
      _
    // Predicated region
    $region18: #{tpu_custom_call.1} parent=1 // pred_check
      _
    $region19: #{tpu_custom_call.1} parent=1 // pred_check_branch
      %49 = sbr.rel (0) target = $region21
    $region20: #{tpu_custom_call.1} parent=1 // pred_region
      %50 = dma.done [#allocation7], 2048
    $region21: #{tpu_custom_call.1} parent=1 // pred_fallthru
      _
    // Predicated region
    $region22: #{tpu_custom_call.1} parent=1 // pred_check
      _
    $region23: #{tpu_custom_call.1} parent=1 // pred_check_branch
      %52 = sbr.rel (0) target = $region25
    $region24: #{tpu_custom_call.1} parent=1 // pred_region
      %53 = dma.done [#allocation7], 1024
    $region25: #{tpu_custom_call.1} parent=1 // pred_fallthru
      _
    %p54 = scmp.eq.s32.totalorder 0, 0
    // Predicated region
    $region26: #{tpu_custom_call.1} parent=1 // pred_check
      %p55 = pneg %p54
    $region27: #{tpu_custom_call.1} parent=1 // pred_check_branch
      %57 = sbr.rel (%p55) target = $region29
    $region28: #{tpu_custom_call.1} parent=1 // pred_region
      %v58 = vld [vmem:[#allocation3] sm:$0xff]
      %59 = vst [vmem:[#allocation2] sm:$0xff] %v58
    $region29: #{tpu_custom_call.1} parent=1 // pred_fallthru
      _
    %v60 = vld [vmem:[#allocation6] sm:$0xff]
    %v61 = vld [vmem:[#allocation6 + $0x8] sm:$0xff]
    %v62 = vld [vmem:[#allocation6 + $0x10] sm:$0xff]
    %v63 = vld [vmem:[#allocation6 + $0x18] sm:$0xff]
    %v64 = vld [vmem:[#allocation6 + $0x20] sm:$0xff]
    %v65 = vld [vmem:[#allocation6 + $0x28] sm:$0xff]
    %v66 = vld [vmem:[#allocation6 + $0x30] sm:$0xff]
    %v67 = vld [vmem:[#allocation6 + $0x38] sm:$0xff]
    %v68 = vld [vmem:[#allocation6 + $0x40] sm:$0xff]
    %v69 = vld [vmem:[#allocation6 + $0x48] sm:$0xff]
    %v70 = vld [vmem:[#allocation6 + $0x50] sm:$0xff]
    %v71 = vld [vmem:[#allocation6 + $0x58] sm:$0xff]
    %v72 = vld [vmem:[#allocation6 + $0x60] sm:$0xff]
    %v73 = vld [vmem:[#allocation6 + $0x68] sm:$0xff]
    %v74 = vld [vmem:[#allocation6 + $0x70] sm:$0xff]
    %v75 = vld [vmem:[#allocation6 + $0x78] sm:$0xff]
    %v76 = vld [vmem:[#allocation2] sm:$0xff]
    %77 = vmatprep.subr.mxu0 0.0
    %78 = vmatpush1.msra.mxu0 %v60
    %79 = vmatprep.subr.mxu0 0.0
    %80 = vmatpush1.msra.mxu0 %v61
    %81 = vmatprep.subr.mxu0 0.0
    %82 = vmatpush1.msra.mxu0 %v62
    %83 = vmatprep.subr.mxu0 0.0
    %84 = vmatpush1.msra.mxu0 %v63
    %85 = vmatprep.subr.mxu0 0.0
    %86 = vmatpush1.msra.mxu0 %v64
    %87 = vmatprep.subr.mxu0 0.0
    %88 = vmatpush1.msra.mxu0 %v65
    %89 = vmatprep.subr.mxu0 0.0
    %90 = vmatpush1.msra.mxu0 %v66
    %91 = vmatprep.subr.mxu0 0.0
    %92 = vmatpush1.msra.mxu0 %v67
    %93 = vmatprep.subr.mxu0 0.0
    %94 = vmatpush1.msra.mxu0 %v68
    %95 = vmatprep.subr.mxu0 0.0
    %96 = vmatpush1.msra.mxu0 %v69
    %97 = vmatprep.subr.mxu0 0.0
    %98 = vmatpush1.msra.mxu0 %v70
    %99 = vmatprep.subr.mxu0 0.0
    %100 = vmatpush1.msra.mxu0 %v71
    %101 = vmatprep.subr.mxu0 0.0
    %102 = vmatpush1.msra.mxu0 %v72
    %103 = vmatprep.subr.mxu0 0.0
    %104 = vmatpush1.msra.mxu0 %v73
    %105 = vmatprep.subr.mxu0 0.0
    %106 = vmatpush1.msra.mxu0 %v74
    %107 = vmatprep.subr.mxu0 0.0
    %108 = vmatpush1.msra.mxu0 %v75
    %109 = vmatprep.subr.mxu0 0.0
    %110 = vmatpush1.msra.mxu0 0.0
    %111 = vmatprep.subr.mxu0 0.0
    %112 = vmatpush1.msra.mxu0 0.0
    %113 = vmatprep.subr.mxu0 0.0
    %114 = vmatpush1.msra.mxu0 0.0
    %115 = vmatprep.subr.mxu0 0.0
    %116 = vmatpush1.msra.mxu0 0.0
    %117 = vmatprep.subr.mxu0 0.0
    %118 = vmatpush1.msra.mxu0 0.0
    %119 = vmatprep.subr.mxu0 0.0
    %120 = vmatpush1.msra.mxu0 0.0
    %121 = vmatprep.subr.mxu0 0.0
    %122 = vmatpush1.msra.mxu0 0.0
    %123 = vmatprep.subr.mxu0 0.0
    %124 = vmatpush1.msra.mxu0 0.0
    %125 = vmatprep.subr.mxu0 0.0
    %126 = vmatpush1.msra.mxu0 0.0
    %127 = vmatprep.subr.mxu0 0.0
    %128 = vmatpush1.msra.mxu0 0.0
    %129 = vmatprep.subr.mxu0 0.0
    %130 = vmatpush1.msra.mxu0 0.0
    %131 = vmatprep.subr.mxu0 0.0
    %132 = vmatpush1.msra.mxu0 0.0
    %133 = vmatprep.subr.mxu0 0.0
    %134 = vmatpush1.msra.mxu0 0.0
    %135 = vmatprep.subr.mxu0 0.0
    %136 = vmatpush1.msra.mxu0 0.0
    %137 = vmatprep.subr.mxu0 0.0
    %138 = vmatpush1.msra.mxu0 0.0
    %139 = vmatprep.subr.mxu0 0.0
    %140 = vmatpush1.msra.mxu0 0.0
    %141 = vmatprep.mubr.f32.mxu0 0.0
    %142 = vmatmul.mubr.f32.gmra.mrb[0].mxu0 %v76
    %v143 = vpop.f32.mrb[0].mxu0
    %v144 = vadd.f32 0.0, %v143
    %v145 = vpop.f32.mrb[0].mxu0
    %146 = vdwg.mxu0
    %v147 = vld [vmem:[#allocation8] sm:$0xff]
    %v148 = vadd.f32 %v147, %v144
    %v149 = vtanh.pop %v148
    %150 = vst [vmem:[#allocation9] sm:$0xff] %v149
    %151 = vmatprep.subr.mxu0 0.0
    %152 = vmatpush1.msra.mxu0 %v60
    %153 = vmatprep.subr.mxu0 0.0
    %154 = vmatpush1.msra.mxu0 %v61
    %155 = vmatprep.subr.mxu0 0.0
    %156 = vmatpush1.msra.mxu0 %v62
    %157 = vmatprep.subr.mxu0 0.0
    %158 = vmatpush1.msra.mxu0 %v63
    %159 = vmatprep.subr.mxu0 0.0
    %160 = vmatpush1.msra.mxu0 %v64
    %161 = vmatprep.subr.mxu0 0.0
    %162 = vmatpush1.msra.mxu0 %v65
    %163 = vmatprep.subr.mxu0 0.0
    %164 = vmatpush1.msra.mxu0 %v66
    %165 = vmatprep.subr.mxu0 0.0
    %166 = vmatpush1.msra.mxu0 %v67
    %167 = vmatprep.subr.mxu0 0.0
    %168 = vmatpush1.msra.mxu0 %v68
    %169 = vmatprep.subr.mxu0 0.0
    %170 = vmatpush1.msra.mxu0 %v69
    %171 = vmatprep.subr.mxu0 0.0
    %172 = vmatpush1.msra.mxu0 %v70
    %173 = vmatprep.subr.mxu0 0.0
    %174 = vmatpush1.msra.mxu0 %v71
    %175 = vmatprep.subr.mxu0 0.0
    %176 = vmatpush1.msra.mxu0 %v72
    %177 = vmatprep.subr.mxu0 0.0
    %178 = vmatpush1.msra.mxu0 %v73
    %179 = vmatprep.subr.mxu0 0.0
    %180 = vmatpush1.msra.mxu0 %v74
    %181 = vmatprep.subr.mxu0 0.0
    %182 = vmatpush1.msra.mxu0 %v75
    %183 = vmatprep.subr.mxu0 0.0
    %184 = vmatpush1.msra.mxu0 0.0
    %185 = vmatprep.subr.mxu0 0.0
    %186 = vmatpush1.msra.mxu0 0.0
    %187 = vmatprep.subr.mxu0 0.0
    %188 = vmatpush1.msra.mxu0 0.0
    %189 = vmatprep.subr.mxu0 0.0
    %190 = vmatpush1.msra.mxu0 0.0
    %191 = vmatprep.subr.mxu0 0.0
    %192 = vmatpush1.msra.mxu0 0.0
    %193 = vmatprep.subr.mxu0 0.0
    %194 = vmatpush1.msra.mxu0 0.0
    %195 = vmatprep.subr.mxu0 0.0
    %196 = vmatpush1.msra.mxu0 0.0
    %197 = vmatprep.subr.mxu0 0.0
    %198 = vmatpush1.msra.mxu0 0.0
    %199 = vmatprep.subr.mxu0 0.0
    %200 = vmatpush1.msra.mxu0 0.0
    %201 = vmatprep.subr.mxu0 0.0
    %202 = vmatpush1.msra.mxu0 0.0
    %203 = vmatprep.subr.mxu0 0.0
    %204 = vmatpush1.msra.mxu0 0.0
    %205 = vmatprep.subr.mxu0 0.0
    %206 = vmatpush1.msra.mxu0 0.0
    %207 = vmatprep.subr.mxu0 0.0
    %208 = vmatpush1.msra.mxu0 0.0
    %209 = vmatprep.subr.mxu0 0.0
    %210 = vmatpush1.msra.mxu0 0.0
    %211 = vmatprep.subr.mxu0 0.0
    %212 = vmatpush1.msra.mxu0 0.0
    %213 = vmatprep.subr.mxu0 0.0
    %214 = vmatpush1.msra.mxu0 0.0
    %215 = vmatprep.mubr.f32.mxu0 0.0
    %216 = vmatmul.mubr.f32.gmra.mrb[0].mxu0 %v149
    %v217 = vpop.f32.mrb[0].mxu0
    %v218 = vadd.f32 0.0, %v217
    %v219 = vpop.f32.mrb[0].mxu0
    %220 = vdwg.mxu0
    %s221 = scalar_lea.vmem [#allocation8], 8
    %v222 = vld [vmem:[%s221] sm:$0xff]
    %v223 = vadd.f32 %v222, %v218
    %v224 = vtanh.pop %v223
    %s225 = scalar_lea.vmem [#allocation9], 8
    %226 = vst [vmem:[%s225] sm:$0xff] %v224
    %227 = vmatprep.subr.mxu0 0.0
    %228 = vmatpush1.msra.mxu0 %v60
    %229 = vmatprep.subr.mxu0 0.0
    %230 = vmatpush1.msra.mxu0 %v61
    %231 = vmatprep.subr.mxu0 0.0
    %232 = vmatpush1.msra.mxu0 %v62
    %233 = vmatprep.subr.mxu0 0.0
    %234 = vmatpush1.msra.mxu0 %v63
    %235 = vmatprep.subr.mxu0 0.0
    %236 = vmatpush1.msra.mxu0 %v64
    %237 = vmatprep.subr.mxu0 0.0
    %238 = vmatpush1.msra.mxu0 %v65
    %239 = vmatprep.subr.mxu0 0.0
    %240 = vmatpush1.msra.mxu0 %v66
    %241 = vmatprep.subr.mxu0 0.0
    %242 = vmatpush1.msra.mxu0 %v67
    %243 = vmatprep.subr.mxu0 0.0
    %244 = vmatpush1.msra.mxu0 %v68
    %245 = vmatprep.subr.mxu0 0.0
    %246 = vmatpush1.msra.mxu0 %v69
    %247 = vmatprep.subr.mxu0 0.0
    %248 = vmatpush1.msra.mxu0 %v70
    %249 = vmatprep.subr.mxu0 0.0
    %250 = vmatpush1.msra.mxu0 %v71
    %251 = vmatprep.subr.mxu0 0.0
    %252 = vmatpush1.msra.mxu0 %v72
    %253 = vmatprep.subr.mxu0 0.0
    %254 = vmatpush1.msra.mxu0 %v73
    %255 = vmatprep.subr.mxu0 0.0
    %256 = vmatpush1.msra.mxu0 %v74
    %257 = vmatprep.subr.mxu0 0.0
    %258 = vmatpush1.msra.mxu0 %v75
    %259 = vmatprep.subr.mxu0 0.0
    %260 = vmatpush1.msra.mxu0 0.0
    %261 = vmatprep.subr.mxu0 0.0
    %262 = vmatpush1.msra.mxu0 0.0
    %263 = vmatprep.subr.mxu0 0.0
    %264 = vmatpush1.msra.mxu0 0.0
    %265 = vmatprep.subr.mxu0 0.0
    %266 = vmatpush1.msra.mxu0 0.0
    %267 = vmatprep.subr.mxu0 0.0
    %268 = vmatpush1.msra.mxu0 0.0
    %269 = vmatprep.subr.mxu0 0.0
    %270 = vmatpush1.msra.mxu0 0.0
    %271 = vmatprep.subr.mxu0 0.0
    %272 = vmatpush1.msra.mxu0 0.0
    %273 = vmatprep.subr.mxu0 0.0
    %274 = vmatpush1.msra.mxu0 0.0
    %275 = vmatprep.subr.mxu0 0.0
    %276 = vmatpush1.msra.mxu0 0.0
    %277 = vmatprep.subr.mxu0 0.0
    %278 = vmatpush1.msra.mxu0 0.0
    %279 = vmatprep.subr.mxu0 0.0
    %280 = vmatpush1.msra.mxu0 0.0
    %281 = vmatprep.subr.mxu0 0.0
    %282 = vmatpush1.msra.mxu0 0.0
    %283 = vmatprep.subr.mxu0 0.0
    %284 = vmatpush1.msra.mxu0 0.0
    %285 = vmatprep.subr.mxu0 0.0
    %286 = vmatpush1.msra.mxu0 0.0
    %287 = vmatprep.subr.mxu0 0.0
    %288 = vmatpush1.msra.mxu0 0.0
    %289 = vmatprep.subr.mxu0 0.0
    %290 = vmatpush1.msra.mxu0 0.0
    %291 = vmatprep.mubr.f32.mxu0 0.0
    %292 = vmatmul.mubr.f32.gmra.mrb[0].mxu0 %v224
    %v293 = vpop.f32.mrb[0].mxu0
    %v294 = vadd.f32 0.0, %v293
    %v295 = vpop.f32.mrb[0].mxu0
    %296 = vdwg.mxu0
    %s297 = scalar_lea.vmem [#allocation8], 16
    %v298 = vld [vmem:[%s297] sm:$0xff]
    %v299 = vadd.f32 %v298, %v294
    %v300 = vtanh.pop %v299
    %s301 = scalar_lea.vmem [#allocation9], 16
    %302 = vst [vmem:[%s301] sm:$0xff] %v300
    %303 = vmatprep.subr.mxu0 0.0
    %304 = vmatpush1.msra.mxu0 %v60
    %305 = vmatprep.subr.mxu0 0.0
    %306 = vmatpush1.msra.mxu0 %v61
    %307 = vmatprep.subr.mxu0 0.0
    %308 = vmatpush1.msra.mxu0 %v62
    %309 = vmatprep.subr.mxu0 0.0
    %310 = vmatpush1.msra.mxu0 %v63
    %311 = vmatprep.subr.mxu0 0.0
    %312 = vmatpush1.msra.mxu0 %v64
    %313 = vmatprep.subr.mxu0 0.0
    %314 = vmatpush1.msra.mxu0 %v65
    %315 = vmatprep.subr.mxu0 0.0
    %316 = vmatpush1.msra.mxu0 %v66
    %317 = vmatprep.subr.mxu0 0.0
    %318 = vmatpush1.msra.mxu0 %v67
    %319 = vmatprep.subr.mxu0 0.0
    %320 = vmatpush1.msra.mxu0 %v68
    %321 = vmatprep.subr.mxu0 0.0
    %322 = vmatpush1.msra.mxu0 %v69
    %323 = vmatprep.subr.mxu0 0.0
    %324 = vmatpush1.msra.mxu0 %v70
    %325 = vmatprep.subr.mxu0 0.0
    %326 = vmatpush1.msra.mxu0 %v71
    %327 = vmatprep.subr.mxu0 0.0
    %328 = vmatpush1.msra.mxu0 %v72
    %329 = vmatprep.subr.mxu0 0.0
    %330 = vmatpush1.msra.mxu0 %v73
    %331 = vmatprep.subr.mxu0 0.0
    %332 = vmatpush1.msra.mxu0 %v74
    %333 = vmatprep.subr.mxu0 0.0
    %334 = vmatpush1.msra.mxu0 %v75
    %335 = vmatprep.subr.mxu0 0.0
    %336 = vmatpush1.msra.mxu0 0.0
    %337 = vmatprep.subr.mxu0 0.0
    %338 = vmatpush1.msra.mxu0 0.0
    %339 = vmatprep.subr.mxu0 0.0
    %340 = vmatpush1.msra.mxu0 0.0
    %341 = vmatprep.subr.mxu0 0.0
    %342 = vmatpush1.msra.mxu0 0.0
    %343 = vmatprep.subr.mxu0 0.0
    %344 = vmatpush1.msra.mxu0 0.0
    %345 = vmatprep.subr.mxu0 0.0
    %346 = vmatpush1.msra.mxu0 0.0
    %347 = vmatprep.subr.mxu0 0.0
    %348 = vmatpush1.msra.mxu0 0.0
    %349 = vmatprep.subr.mxu0 0.0
    %350 = vmatpush1.msra.mxu0 0.0
    %351 = vmatprep.subr.mxu0 0.0
    %352 = vmatpush1.msra.mxu0 0.0
    %353 = vmatprep.subr.mxu0 0.0
    %354 = vmatpush1.msra.mxu0 0.0
    %355 = vmatprep.subr.mxu0 0.0
    %356 = vmatpush1.msra.mxu0 0.0
    %357 = vmatprep.subr.mxu0 0.0
    %358 = vmatpush1.msra.mxu0 0.0
    %359 = vmatprep.subr.mxu0 0.0
    %360 = vmatpush1.msra.mxu0 0.0
    %361 = vmatprep.subr.mxu0 0.0
    %362 = vmatpush1.msra.mxu0 0.0
    %363 = vmatprep.subr.mxu0 0.0
    %364 = vmatpush1.msra.mxu0 0.0
    %365 = vmatprep.subr.mxu0 0.0
    %366 = vmatpush1.msra.mxu0 0.0
    %367 = vmatprep.mubr.f32.mxu0 0.0
    %368 = vmatmul.mubr.f32.gmra.mrb[0].mxu0 %v300
    %v369 = vpop.f32.mrb[0].mxu0
    %v370 = vadd.f32 0.0, %v369
    %v371 = vpop.f32.mrb[0].mxu0
    %372 = vdwg.mxu0
    %s373 = scalar_lea.vmem [#allocation8], 24
    %v374 = vld [vmem:[%s373] sm:$0xff]
    %v375 = vadd.f32 %v374, %v370
    %v376 = vtanh.pop %v375
    %s377 = scalar_lea.vmem [#allocation9], 24
    %378 = vst [vmem:[%s377] sm:$0xff] %v376
    %379 = vmatprep.subr.mxu0 0.0
    %380 = vmatpush1.msra.mxu0 %v60
    %381 = vmatprep.subr.mxu0 0.0
    %382 = vmatpush1.msra.mxu0 %v61
    %383 = vmatprep.subr.mxu0 0.0
    %384 = vmatpush1.msra.mxu0 %v62
    %385 = vmatprep.subr.mxu0 0.0
    %386 = vmatpush1.msra.mxu0 %v63
    %387 = vmatprep.subr.mxu0 0.0
    %388 = vmatpush1.msra.mxu0 %v64
    %389 = vmatprep.subr.mxu0 0.0
    %390 = vmatpush1.msra.mxu0 %v65
    %391 = vmatprep.subr.mxu0 0.0
    %392 = vmatpush1.msra.mxu0 %v66
    %393 = vmatprep.subr.mxu0 0.0
    %394 = vmatpush1.msra.mxu0 %v67
    %395 = vmatprep.subr.mxu0 0.0
    %396 = vmatpush1.msra.mxu0 %v68
    %397 = vmatprep.subr.mxu0 0.0
    %398 = vmatpush1.msra.mxu0 %v69
    %399 = vmatprep.subr.mxu0 0.0
    %400 = vmatpush1.msra.mxu0 %v70
    %401 = vmatprep.subr.mxu0 0.0
    %402 = vmatpush1.msra.mxu0 %v71
    %403 = vmatprep.subr.mxu0 0.0
    %404 = vmatpush1.msra.mxu0 %v72
    %405 = vmatprep.subr.mxu0 0.0
    %406 = vmatpush1.msra.mxu0 %v73
    %407 = vmatprep.subr.mxu0 0.0
    %408 = vmatpush1.msra.mxu0 %v74
    %409 = vmatprep.subr.mxu0 0.0
    %410 = vmatpush1.msra.mxu0 %v75
    %411 = vmatprep.subr.mxu0 0.0
    %412 = vmatpush1.msra.mxu0 0.0
    %413 = vmatprep.subr.mxu0 0.0
    %414 = vmatpush1.msra.mxu0 0.0
    %415 = vmatprep.subr.mxu0 0.0
    %416 = vmatpush1.msra.mxu0 0.0
    %417 = vmatprep.subr.mxu0 0.0
    %418 = vmatpush1.msra.mxu0 0.0
    %419 = vmatprep.subr.mxu0 0.0
    %420 = vmatpush1.msra.mxu0 0.0
    %421 = vmatprep.subr.mxu0 0.0
    %422 = vmatpush1.msra.mxu0 0.0
    %423 = vmatprep.subr.mxu0 0.0
    %424 = vmatpush1.msra.mxu0 0.0
    %425 = vmatprep.subr.mxu0 0.0
    %426 = vmatpush1.msra.mxu0 0.0
    %427 = vmatprep.subr.mxu0 0.0
    %428 = vmatpush1.msra.mxu0 0.0
    %429 = vmatprep.subr.mxu0 0.0
    %430 = vmatpush1.msra.mxu0 0.0
    %431 = vmatprep.subr.mxu0 0.0
    %432 = vmatpush1.msra.mxu0 0.0
    %433 = vmatprep.subr.mxu0 0.0
    %434 = vmatpush1.msra.mxu0 0.0
    %435 = vmatprep.subr.mxu0 0.0
    %436 = vmatpush1.msra.mxu0 0.0
    %437 = vmatprep.subr.mxu0 0.0
    %438 = vmatpush1.msra.mxu0 0.0
    %439 = vmatprep.subr.mxu0 0.0
    %440 = vmatpush1.msra.mxu0 0.0
    %441 = vmatprep.subr.mxu0 0.0
    %442 = vmatpush1.msra.mxu0 0.0
    %443 = vmatprep.mubr.f32.mxu0 0.0
    %444 = vmatmul.mubr.f32.gmra.mrb[0].mxu0 %v376
    %v445 = vpop.f32.mrb[0].mxu0
    %v446 = vadd.f32 0.0, %v445
    %v447 = vpop.f32.mrb[0].mxu0
    %448 = vdwg.mxu0
    %s449 = scalar_lea.vmem [#allocation8], 32
    %v450 = vld [vmem:[%s449] sm:$0xff]
    %v451 = vadd.f32 %v450, %v446
    %v452 = vtanh.pop %v451
    %s453 = scalar_lea.vmem [#allocation9], 32
    %454 = vst [vmem:[%s453] sm:$0xff] %v452
    %455 = vmatprep.subr.mxu0 0.0
    %456 = vmatpush1.msra.mxu0 %v60
    %457 = vmatprep.subr.mxu0 0.0
    %458 = vmatpush1.msra.mxu0 %v61
    %459 = vmatprep.subr.mxu0 0.0
    %460 = vmatpush1.msra.mxu0 %v62
    %461 = vmatprep.subr.mxu0 0.0
    %462 = vmatpush1.msra.mxu0 %v63
    %463 = vmatprep.subr.mxu0 0.0
    %464 = vmatpush1.msra.mxu0 %v64
    %465 = vmatprep.subr.mxu0 0.0
    %466 = vmatpush1.msra.mxu0 %v65
    %467 = vmatprep.subr.mxu0 0.0
    %468 = vmatpush1.msra.mxu0 %v66
    %469 = vmatprep.subr.mxu0 0.0
    %470 = vmatpush1.msra.mxu0 %v67
    %471 = vmatprep.subr.mxu0 0.0
    %472 = vmatpush1.msra.mxu0 %v68
    %473 = vmatprep.subr.mxu0 0.0
    %474 = vmatpush1.msra.mxu0 %v69
    %475 = vmatprep.subr.mxu0 0.0
    %476 = vmatpush1.msra.mxu0 %v70
    %477 = vmatprep.subr.mxu0 0.0
    %478 = vmatpush1.msra.mxu0 %v71
    %479 = vmatprep.subr.mxu0 0.0
    %480 = vmatpush1.msra.mxu0 %v72
    %481 = vmatprep.subr.mxu0 0.0
    %482 = vmatpush1.msra.mxu0 %v73
    %483 = vmatprep.subr.mxu0 0.0
    %484 = vmatpush1.msra.mxu0 %v74
    %485 = vmatprep.subr.mxu0 0.0
    %486 = vmatpush1.msra.mxu0 %v75
    %487 = vmatprep.subr.mxu0 0.0
    %488 = vmatpush1.msra.mxu0 0.0
    %489 = vmatprep.subr.mxu0 0.0
    %490 = vmatpush1.msra.mxu0 0.0
    %491 = vmatprep.subr.mxu0 0.0
    %492 = vmatpush1.msra.mxu0 0.0
    %493 = vmatprep.subr.mxu0 0.0
    %494 = vmatpush1.msra.mxu0 0.0
    %495 = vmatprep.subr.mxu0 0.0
    %496 = vmatpush1.msra.mxu0 0.0
    %497 = vmatprep.subr.mxu0 0.0
    %498 = vmatpush1.msra.mxu0 0.0
    %499 = vmatprep.subr.mxu0 0.0
    %500 = vmatpush1.msra.mxu0 0.0
    %501 = vmatprep.subr.mxu0 0.0
    %502 = vmatpush1.msra.mxu0 0.0
    %503 = vmatprep.subr.mxu0 0.0
    %504 = vmatpush1.msra.mxu0 0.0
    %505 = vmatprep.subr.mxu0 0.0
    %506 = vmatpush1.msra.mxu0 0.0
    %507 = vmatprep.subr.mxu0 0.0
    %508 = vmatpush1.msra.mxu0 0.0
    %509 = vmatprep.subr.mxu0 0.0
    %510 = vmatpush1.msra.mxu0 0.0
    %511 = vmatprep.subr.mxu0 0.0
    %512 = vmatpush1.msra.mxu0 0.0
    %513 = vmatprep.subr.mxu0 0.0
    %514 = vmatpush1.msra.mxu0 0.0
    %515 = vmatprep.subr.mxu0 0.0
    %516 = vmatpush1.msra.mxu0 0.0
    %517 = vmatprep.subr.mxu0 0.0
    %518 = vmatpush1.msra.mxu0 0.0
    %519 = vmatprep.mubr.f32.mxu0 0.0
    %520 = vmatmul.mubr.f32.gmra.mrb[0].mxu0 %v452
    %v521 = vpop.f32.mrb[0].mxu0
    %v522 = vadd.f32 0.0, %v521
    %v523 = vpop.f32.mrb[0].mxu0
    %524 = vdwg.mxu0
    %s525 = scalar_lea.vmem [#allocation8], 40
    %v526 = vld [vmem:[%s525] sm:$0xff]
    %v527 = vadd.f32 %v526, %v522
    %v528 = vtanh.pop %v527
    %s529 = scalar_lea.vmem [#allocation9], 40
    %530 = vst [vmem:[%s529] sm:$0xff] %v528
    %531 = vmatprep.subr.mxu0 0.0
    %532 = vmatpush1.msra.mxu0 %v60
    %533 = vmatprep.subr.mxu0 0.0
    %534 = vmatpush1.msra.mxu0 %v61
    %535 = vmatprep.subr.mxu0 0.0
    %536 = vmatpush1.msra.mxu0 %v62
    %537 = vmatprep.subr.mxu0 0.0
    %538 = vmatpush1.msra.mxu0 %v63
    %539 = vmatprep.subr.mxu0 0.0
    %540 = vmatpush1.msra.mxu0 %v64
    %541 = vmatprep.subr.mxu0 0.0
    %542 = vmatpush1.msra.mxu0 %v65
    %543 = vmatprep.subr.mxu0 0.0
    %544 = vmatpush1.msra.mxu0 %v66
    %545 = vmatprep.subr.mxu0 0.0
    %546 = vmatpush1.msra.mxu0 %v67
    %547 = vmatprep.subr.mxu0 0.0
    %548 = vmatpush1.msra.mxu0 %v68
    %549 = vmatprep.subr.mxu0 0.0
    %550 = vmatpush1.msra.mxu0 %v69
    %551 = vmatprep.subr.mxu0 0.0
    %552 = vmatpush1.msra.mxu0 %v70
    %553 = vmatprep.subr.mxu0 0.0
    %554 = vmatpush1.msra.mxu0 %v71
    %555 = vmatprep.subr.mxu0 0.0
    %556 = vmatpush1.msra.mxu0 %v72
    %557 = vmatprep.subr.mxu0 0.0
    %558 = vmatpush1.msra.mxu0 %v73
    %559 = vmatprep.subr.mxu0 0.0
    %560 = vmatpush1.msra.mxu0 %v74
    %561 = vmatprep.subr.mxu0 0.0
    %562 = vmatpush1.msra.mxu0 %v75
    %563 = vmatprep.subr.mxu0 0.0
    %564 = vmatpush1.msra.mxu0 0.0
    %565 = vmatprep.subr.mxu0 0.0
    %566 = vmatpush1.msra.mxu0 0.0
    %567 = vmatprep.subr.mxu0 0.0
    %568 = vmatpush1.msra.mxu0 0.0
    %569 = vmatprep.subr.mxu0 0.0
    %570 = vmatpush1.msra.mxu0 0.0
    %571 = vmatprep.subr.mxu0 0.0
    %572 = vmatpush1.msra.mxu0 0.0
    %573 = vmatprep.subr.mxu0 0.0
    %574 = vmatpush1.msra.mxu0 0.0
    %575 = vmatprep.subr.mxu0 0.0
    %576 = vmatpush1.msra.mxu0 0.0
    %577 = vmatprep.subr.mxu0 0.0
    %578 = vmatpush1.msra.mxu0 0.0
    %579 = vmatprep.subr.mxu0 0.0
    %580 = vmatpush1.msra.mxu0 0.0
    %581 = vmatprep.subr.mxu0 0.0
    %582 = vmatpush1.msra.mxu0 0.0
    %583 = vmatprep.subr.mxu0 0.0
    %584 = vmatpush1.msra.mxu0 0.0
    %585 = vmatprep.subr.mxu0 0.0
    %586 = vmatpush1.msra.mxu0 0.0
    %587 = vmatprep.subr.mxu0 0.0
    %588 = vmatpush1.msra.mxu0 0.0
    %589 = vmatprep.subr.mxu0 0.0
    %590 = vmatpush1.msra.mxu0 0.0
    %591 = vmatprep.subr.mxu0 0.0
    %592 = vmatpush1.msra.mxu0 0.0
    %593 = vmatprep.subr.mxu0 0.0
    %594 = vmatpush1.msra.mxu0 0.0
    %595 = vmatprep.mubr.f32.mxu0 0.0
    %596 = vmatmul.mubr.f32.gmra.mrb[0].mxu0 %v528
    %v597 = vpop.f32.mrb[0].mxu0
    %v598 = vadd.f32 0.0, %v597
    %v599 = vpop.f32.mrb[0].mxu0
    %600 = vdwg.mxu0
    %s601 = scalar_lea.vmem [#allocation8], 48
    %v602 = vld [vmem:[%s601] sm:$0xff]
    %v603 = vadd.f32 %v602, %v598
    %v604 = vtanh.pop %v603
    %s605 = scalar_lea.vmem [#allocation9], 48
    %606 = vst [vmem:[%s605] sm:$0xff] %v604
    %607 = vmatprep.subr.mxu0 0.0
    %608 = vmatpush1.msra.mxu0 %v60
    %609 = vmatprep.subr.mxu0 0.0
    %610 = vmatpush1.msra.mxu0 %v61
    %611 = vmatprep.subr.mxu0 0.0
    %612 = vmatpush1.msra.mxu0 %v62
    %613 = vmatprep.subr.mxu0 0.0
    %614 = vmatpush1.msra.mxu0 %v63
    %615 = vmatprep.subr.mxu0 0.0
    %616 = vmatpush1.msra.mxu0 %v64
    %617 = vmatprep.subr.mxu0 0.0
    %618 = vmatpush1.msra.mxu0 %v65
    %619 = vmatprep.subr.mxu0 0.0
    %620 = vmatpush1.msra.mxu0 %v66
    %621 = vmatprep.subr.mxu0 0.0
    %622 = vmatpush1.msra.mxu0 %v67
    %623 = vmatprep.subr.mxu0 0.0
    %624 = vmatpush1.msra.mxu0 %v68
    %625 = vmatprep.subr.mxu0 0.0
    %626 = vmatpush1.msra.mxu0 %v69
    %627 = vmatprep.subr.mxu0 0.0
    %628 = vmatpush1.msra.mxu0 %v70
    %629 = vmatprep.subr.mxu0 0.0
    %630 = vmatpush1.msra.mxu0 %v71
    %631 = vmatprep.subr.mxu0 0.0
    %632 = vmatpush1.msra.mxu0 %v72
    %633 = vmatprep.subr.mxu0 0.0
    %634 = vmatpush1.msra.mxu0 %v73
    %635 = vmatprep.subr.mxu0 0.0
    %636 = vmatpush1.msra.mxu0 %v74
    %637 = vmatprep.subr.mxu0 0.0
    %638 = vmatpush1.msra.mxu0 %v75
    %639 = vmatprep.subr.mxu0 0.0
    %640 = vmatpush1.msra.mxu0 0.0
    %641 = vmatprep.subr.mxu0 0.0
    %642 = vmatpush1.msra.mxu0 0.0
    %643 = vmatprep.subr.mxu0 0.0
    %644 = vmatpush1.msra.mxu0 0.0
    %645 = vmatprep.subr.mxu0 0.0
    %646 = vmatpush1.msra.mxu0 0.0
    %647 = vmatprep.subr.mxu0 0.0
    %648 = vmatpush1.msra.mxu0 0.0
    %649 = vmatprep.subr.mxu0 0.0
    %650 = vmatpush1.msra.mxu0 0.0
    %651 = vmatprep.subr.mxu0 0.0
    %652 = vmatpush1.msra.mxu0 0.0
    %653 = vmatprep.subr.mxu0 0.0
    %654 = vmatpush1.msra.mxu0 0.0
    %655 = vmatprep.subr.mxu0 0.0
    %656 = vmatpush1.msra.mxu0 0.0
    %657 = vmatprep.subr.mxu0 0.0
    %658 = vmatpush1.msra.mxu0 0.0
    %659 = vmatprep.subr.mxu0 0.0
    %660 = vmatpush1.msra.mxu0 0.0
    %661 = vmatprep.subr.mxu0 0.0
    %662 = vmatpush1.msra.mxu0 0.0
    %663 = vmatprep.subr.mxu0 0.0
    %664 = vmatpush1.msra.mxu0 0.0
    %665 = vmatprep.subr.mxu0 0.0
    %666 = vmatpush1.msra.mxu0 0.0
    %667 = vmatprep.subr.mxu0 0.0
    %668 = vmatpush1.msra.mxu0 0.0
    %669 = vmatprep.subr.mxu0 0.0
    %670 = vmatpush1.msra.mxu0 0.0
    %671 = vmatprep.mubr.f32.mxu0 0.0
    %672 = vmatmul.mubr.f32.gmra.mrb[0].mxu0 %v604
    %v673 = vpop.f32.mrb[0].mxu0
    %v674 = vadd.f32 0.0, %v673
    %v675 = vpop.f32.mrb[0].mxu0
    %676 = vdwg.mxu0
    %s677 = scalar_lea.vmem [#allocation8], 56
    %v678 = vld [vmem:[%s677] sm:$0xff]
    %v679 = vadd.f32 %v678, %v674
    %v680 = vtanh.pop %v679
    %s681 = scalar_lea.vmem [#allocation9], 56
    %682 = vst [vmem:[%s681] sm:$0xff] %v680
    %683 = vst [vmem:[#allocation2] sm:$0xff] %v680
    // Predicated region
    $region30: #{tpu_custom_call.1} parent=1 // pred_check
      _
    $region31: #{tpu_custom_call.1} parent=1 // pred_check_branch
      %685 = sbr.rel (0) target = $region33
    $region32: #{tpu_custom_call.1} parent=1 // pred_region
      %s687 = ssub.s32 1024, 1024
      %688 = vsyncadd [#allocation5], %s687
      %s689 = sshll.u32 [#allocation9], 4
      %s690 = int_to_ptr.vmem [resolvable:$true] %s689
      %695 = dma.vmem_to_hbm [thread:$0]  %s690, 1024, %s3, [#allocation5], 128, 128, 8
    $region33: #{tpu_custom_call.1} parent=1 // pred_fallthru
      _
    // Predicated region
    $region34: #{tpu_custom_call.1} parent=1 // pred_check
      _
    $region35: #{tpu_custom_call.1} parent=1 // pred_check_branch
      %697 = sbr.rel (0) target = $region37
    $region36: #{tpu_custom_call.1} parent=1 // pred_region
      %698 = dma.done [#allocation5], 1024
    $region37: #{tpu_custom_call.1} parent=1 // pred_fallthru
      _
    %699 = vsyncpa [#allocation4], 1
    %700 = vsyncpa [#allocation7], 1
    %701 = vsyncpa [#allocation5], 1

</llo_original>
